<compile_context>
chip_gen: v7x
topology: tpu7x:2x2x1
jax: 0.10.0
libtpu: 0.0.40
codegen_flags: <defaults>
</compile_context>

<pallas_src>
import math
import functools

import numpy as np
import jax
import jax.numpy as jnp
from jax.experimental import pallas as pl
from jax.experimental.pallas import tpu as pltpu


# ------------------------------------------------------------------
# Linear projection kernel (QKV projection and output projection)
# ------------------------------------------------------------------
def _linear_kernel(x_ref, w_ref, b_ref, o_ref):
    acc = jnp.dot(x_ref[...], w_ref[...], preferred_element_type=jnp.float32)
    o_ref[...] = (acc + b_ref[...]).astype(o_ref.dtype)


def linear_pallas(x2d, w, b, *, out_dtype=None, vmem_budget_bytes=12 * 1024 * 1024):
    """y = x2d @ w + b.  x2d:(M,K)  w:(K,N)  b:(N,)  — row-tiled over M, 'parallel' grid axis.
    Tile size tm is derived from a VMEM byte budget (weights resident + double-buffered blocks)."""
    M, K = x2d.shape
    K2, N = w.shape
    assert K == K2
    out_dtype = x2d.dtype if out_dtype is None else out_dtype
    in_b = jnp.dtype(x2d.dtype).itemsize
    w_b = jnp.dtype(w.dtype).itemsize
    o_b = jnp.dtype(out_dtype).itemsize

    # resident (double-buffered) weight + bias, then per-row double-buffered x/out + f32 acc row
    fixed = 2 * (K * N * w_b + N * 4)
    per_row = 2 * (K * in_b + N * o_b) + N * 4
    tm = max(8, (vmem_budget_bytes - fixed) // per_row)
    # TODO(synk): for very large N the weight should be tiled along N instead of clamping tm.
    tm = int(min(tm, M, 2048))
    if tm >= M and M > 8:
        tm = -(-M // 2)                  # keep >= 2 grid steps so v7x's 2nd TensorCore isn't idle
    if tm < M:
        tm = max(8, (tm // 8) * 8)       # (8,128) rule: second-minor block dim multiple of 8 or full
    grid_m = pl.cdiv(M, tm)

    return pl.pallas_call(
        _linear_kernel,
        out_shape=jax.ShapeDtypeStruct((M, N), out_dtype),
        grid_spec=pltpu.PrefetchScalarGridSpec(
            num_scalar_prefetch=0,
            grid=(grid_m,),
            in_specs=[pl.BlockSpec((tm, K), lambda i: (i, 0)),
                      pl.BlockSpec((K, N), lambda i: (0, 0)),    # weights stay resident
                      pl.BlockSpec((1, N), lambda i: (0, 0))],
            out_specs=pl.BlockSpec((tm, N), lambda i: (i, 0))),
        compiler_params=pltpu.CompilerParams(
            dimension_semantics=("parallel",),
            vmem_limit_bytes=32 * 1024 * 1024),
    )(x2d, w, jnp.asarray(b, jnp.float32).reshape(1, N))


# ------------------------------------------------------------------
# Window attention kernel — a VMEM-budgeted block of WB windows (all heads) per grid step
# ------------------------------------------------------------------
def _window_attn_kernel(*refs, n_head, dim_head, has_mask):
    """refs (with mask):    qkv_ref, bias_ref, mask_ref, o_ref, acc_ref
       refs (without mask): qkv_ref, bias_ref, o_ref, acc_ref
       qkv_ref : (WB, L, 3*nh*dh) bf16, channel-last; Q columns pre-scaled by 1/sqrt(dh)
       bias_ref: (nh, L, L) f32   relative-position bias, resident (constant index_map)
       mask_ref: (WB, L, L) f32   additive shift mask (-1e30 where masked), shift only
       o_ref   : (WB, L, nh*dh)   token-major / channel-last output
       acc_ref : (WB, L, nh*dh)   f32 VMEM scratch (assembled once, stored once)"""
    if has_mask:
        qkv_ref, bias_ref, mask_ref, o_ref, acc_ref = refs
        neg = mask_ref[...]                                  # loaded once, reused per head
    else:
        qkv_ref, bias_ref, o_ref, acc_ref = refs
        neg = None
    nhd = n_head * dim_head
    for h in range(n_head):          # static unroll; each einsum is batched over the WB windows
        lo = h * dim_head
        q = qkv_ref[:, :, lo:lo + dim_head]                          # (WB, L, dh) bf16
        k = qkv_ref[:, :, nhd + lo:nhd + lo + dim_head]              # (WB, L, dh) bf16
        v = qkv_ref[:, :, 2 * nhd + lo:2 * nhd + lo + dim_head]      # (WB, L, dh) bf16

        s = jnp.einsum('wqd,wkd->wqk', q, k,
                       preferred_element_type=jnp.float32)           # (WB, L, L) f32
        s = s + bias_ref[h][None, :, :]
        if neg is not None:
            s = s + neg
        m = jnp.max(s, axis=-1, keepdims=True)
        p = jnp.exp(s - m)
        inv = pl.reciprocal(jnp.sum(p, axis=-1, keepdims=True), approx=True)
        attn = (p * inv).astype(v.dtype)                             # bf16 probs -> MXU path
        acc_ref[:, :, lo:lo + dim_head] = jnp.einsum(
            'wqk,wkd->wqd', attn, v, preferred_element_type=jnp.float32)
    o_ref[...] = acc_ref[...].astype(o_ref.dtype)


def _pick_window_block(n_windows, cap):
    """Window-block size WB and number of window blocks.  Prefer an exact divisor near the cap;
    otherwise use the cap with a cdiv grid (Pallas masks the padded tail block)."""
    cap = max(1, min(cap, n_windows))
    best = 1
    for d in range(1, cap + 1):
        if n_windows % d == 0:
            best = d
    if best * 2 >= cap:                       # divisor close enough to the cap -> no padded tail
        return best, n_windows // best
    return cap, -(-n_windows // cap)          # cdiv; last (partial) block handled by Pallas masking


def window_attention_pallas(qkv_win, rel_bias, add_mask, n_head, dim_head,
                            *, stream_budget_bytes=8 * 1024 * 1024):
    """qkv_win: (B, NW, L, 3*nh*dh)   rel_bias: (nh, L, L) f32
       add_mask: (NW, L, L) f32 additive (-1e30) mask or None    ->    (B, NW, L, nh*dh)"""
    B, NW, L, C3 = qkv_win.shape
    nhd = n_head * dim_head
    assert C3 == 3 * nhd
    in_b = jnp.dtype(qkv_win.dtype).itemsize

    # per-window VMEM bytes: double-buffered streamed blocks + rough f32 intermediates + scratch row
    per_win = (2 * (L * C3 * in_b + L * nhd * in_b
                    + (L * L * 4 if add_mask is not None else 0))
               + 3 * L * L * 4 + L * nhd * 4)
    cap = max(1, min(NW, stream_budget_bytes // per_win))
    WB, n_wblk = _pick_window_block(NW, cap)
    if B * n_wblk < 2 and NW > 1:             # keep >= 2 grid steps for v7x's 2 TensorCores
        WB, n_wblk = _pick_window_block(NW, max(1, -(-NW // 2)))

    kern = functools.partial(_window_attn_kernel, n_head=n_head, dim_head=dim_head,
                             has_mask=add_mask is not None)
    in_specs = [pl.BlockSpec((None, WB, L, C3), lambda b, w: (b, w, 0, 0)),
                pl.BlockSpec((n_head, L, L), lambda b, w: (0, 0, 0))]   # resident, fetched once
    args = [qkv_win, rel_bias]
    if add_mask is not None:
        in_specs.append(pl.BlockSpec((WB, L, L), lambda b, w: (w, 0, 0)))
        args.append(add_mask)

    return pl.pallas_call(
        kern,
        out_shape=jax.ShapeDtypeStruct((B, NW, L, nhd), qkv_win.dtype),
        grid_spec=pltpu.PrefetchScalarGridSpec(
            num_scalar_prefetch=0,
            grid=(B, n_wblk),
            in_specs=in_specs,
            out_specs=pl.BlockSpec((None, WB, L, nhd), lambda b, w: (b, w, 0, 0)),
            scratch_shapes=[pltpu.VMEM((WB, L, nhd), jnp.float32)]),
        compiler_params=pltpu.CompilerParams(
            dimension_semantics=("parallel", "parallel"),
            vmem_limit_bytes=32 * 1024 * 1024),
    )(*args)


# ------------------------------------------------------------------
# Faithful port of make_mask_pos (pure NumPy glue, identical semantics)
# ------------------------------------------------------------------
def make_mask_pos(input_size, window_size, shift):
    h, w = input_size
    ws = window_size
    h //= ws
    w //= ws
    yy, xx = np.meshgrid(np.arange(ws * h), np.arange(ws * w), indexing='ij')
    if shift:
        roll = -(ws // 2)
        yy = np.roll(yy, (roll, roll), axis=(0, 1))
        xx = np.roll(xx, (roll, roll), axis=(0, 1))
    y_c = yy.reshape(h, ws, w, ws).transpose(0, 2, 1, 3).reshape(-1, ws, ws)
    x_c = xx.reshape(h, ws, w, ws).transpose(0, 2, 1, 3).reshape(-1, ws, ws)

    x_ct = x_c.transpose(0, 2, 1)
    x_diff = x_ct[:, None, :, :] - x_ct[:, :, None, :]
    x_diff = np.swapaxes(x_diff, 2, 3)
    x_flag = np.abs(x_diff) < ws
    y_diff = y_c[:, None, :, :] - y_c[:, :, None, :]
    y_flag = np.abs(y_diff) < ws
    x_diff = x_diff[:, None]
    y_diff = y_diff[:, :, None]
    if shift:
        local_mask = x_flag[:, None] & y_flag[:, :, None]
        x_diff = x_diff * local_mask
        y_diff = y_diff * local_mask
    else:
        local_mask = None
        full = (x_flag.shape[0], ws, ws, ws, ws)
        x_diff = np.broadcast_to(x_diff, full)
        y_diff = np.broadcast_to(y_diff, full)
    x_pos = x_diff + (ws - 1)
    y_pos = y_diff + (ws - 1)
    return y_pos, x_pos, local_mask


# ------------------------------------------------------------------
# Module
# ------------------------------------------------------------------
class MultiHeadedLocalAttentionPallas:
    def __init__(self, dim, n_head, dim_head, input_size, window_size, shift, key,
                 compute_dtype=jnp.bfloat16):
        self.dim = dim
        self.n_head = n_head
        self.dim_head = dim_head
        self.input_size = input_size
        self.window_size = window_size
        self.shift = shift
        self.compute_dtype = compute_dtype

        nhd = n_head * dim_head
        k1, k2, k3, k4, k5 = jax.random.split(key, 5)
        # f32 "master" parameters (used by the pure-JAX reference).
        # nn.Linear(dim, 3*nhd) / nn.Linear(nhd, dim) — stored as (in, out) for x @ W.
        self.w_qkv = jax.random.normal(k1, (dim, 3 * nhd), jnp.float32) * 0.05
        self.b_qkv = jax.random.normal(k2, (3 * nhd,), jnp.float32) * 0.05
        self.w_out = jax.random.normal(k3, (nhd, dim), jnp.float32) * 0.05
        self.b_out = jax.random.normal(k4, (dim,), jnp.float32) * 0.05
        # nn.Embedding((2*ws-1)^2, n_head). The PyTorch module zero-initializes this; use small
        # random values here so the relative-position-bias path is actually exercised by the test.
        self.rel_pos_weight = (
            jax.random.normal(k5, ((2 * window_size - 1) ** 2, n_head), jnp.float32) * 0.02)

        y_pos, x_pos, local_mask = make_mask_pos(input_size, window_size, shift)
        ws2 = window_size * window_size
        pos = y_pos * (2 * window_size - 1) + x_pos
        self.pos_table = jnp.asarray(pos[0].reshape(ws2, ws2), jnp.int32)
        n_win = y_pos.shape[0]
        if shift:
            self.attn_mask = jnp.asarray(
                (~local_mask).reshape(n_win, ws2, ws2).astype(np.float32))
        else:
            self.attn_mask = jnp.zeros((n_win, ws2, ws2), jnp.float32)

        # ---- constants folded / cast for the kernels (done once, at init) ----
        scale = 1.0 / math.sqrt(dim_head)
        # fold the 1/sqrt(dh) score scale into the Q columns of the projection
        w_qkv_scaled = self.w_qkv.at[:, :nhd].multiply(scale)
        b_qkv_scaled = self.b_qkv.at[:nhd].multiply(scale)
        self.w_qkv_k = w_qkv_scaled.astype(compute_dtype)     # bf16 matmul operands
        self.b_qkv_k = b_qkv_scaled.astype(jnp.float32)       # bias added post-acc in f32
        self.w_out_k = self.w_out.astype(compute_dtype)
        self.b_out_k = self.b_out.astype(jnp.float32)
        # relative-position bias (nh, L, L), resident in VMEM during the attention kernel
        self.rel_bias = self._rel_bias().astype(jnp.float32)
        # compact additive shift mask (NW, L, L); head-independent, streamed only when shifting
        self.add_mask = (self.attn_mask * jnp.float32(-1e30)) if shift else None

    def _rel_bias(self):
        bias = jnp.take(self.rel_pos_weight, self.pos_table, axis=0)   # (L, L, nh)
        return jnp.transpose(bias, (2, 0, 1))                           # (nh, L, L)

    def __call__(self, x):
        B, H, W, C = x.shape
        ws = self.window_size
        hs, wd = H // ws, W // ws
        nh, dh = self.n_head, self.dim_head
        nhd = nh * dh
        roll = -(ws // 2)

        xc = x.astype(self.compute_dtype)
        if self.shift:
            xc = jnp.roll(xc, (roll, roll), axis=(1, 2))

        # QKV projection (Q columns pre-scaled by 1/sqrt(dh)), bf16 matmul / f32 accumulation
        qkv = linear_pallas(xc.reshape(-1, C), self.w_qkv_k, self.b_qkv_k)
        # window re-layout, token-major / channel-last: (B, NW, L, 3*nh*dh)
        # TODO(synk): fold this re-layout into the attention BlockSpec / a strided DMA gather.
        qkv = qkv.reshape(B, hs, ws, wd, ws, 3 * nhd)
        qkv = qkv.transpose(0, 1, 3, 2, 4, 5).reshape(B, hs * wd, ws * ws, 3 * nhd)

        out = window_attention_pallas(qkv, self.rel_bias, self.add_mask, nh, dh)

        # un-window: (B, NW, L, nh*dh) -> (B, H, W, nh*dh)
        out = out.reshape(B, hs, wd, ws, ws, nhd)
        out = out.transpose(0, 1, 3, 2, 4, 5).reshape(-1, nhd)

        out = linear_pallas(out, self.w_out_k, self.b_out_k, out_dtype=jnp.float32)
        out = out.reshape(B, H, W, C)

        if self.shift:
            out = jnp.roll(out, (-roll, -roll), axis=(1, 2))
        return out

    # Pure-JAX f32 reference (mirrors the PyTorch forward exactly) for correctness checking.
    def reference(self, x):
        B, H, W, C = x.shape
        ws = self.window_size
        hs, wd = H // ws, W // ws
        nh, dh = self.n_head, self.dim_head
        roll = -(ws // 2)
        if self.shift:
            x = jnp.roll(x, (roll, roll), axis=(1, 2))
        qkv = x.reshape(-1, C) @ self.w_qkv + self.b_qkv
        qkv = qkv.reshape(B, H, W, 3 * nh * dh)
        q, k, v = jnp.split(qkv, 3, axis=-1)

        def win(t):
            t = t.reshape(B, hs, ws, wd, ws, nh, dh)
            return t.transpose(0, 1, 3, 5, 2, 4, 6).reshape(B, hs * wd, nh, ws * ws, dh)

        q, k, v = win(q), win(k), win(v)
        score = jnp.einsum('bwhqd,bwhkd->bwhqk', q, k) / math.sqrt(dh)
        score = score + self._rel_bias()[None, None]
        score = jnp.where(self.attn_mask[None, :, None] > 0.5, -jnp.inf, score)
        attn = jax.nn.softmax(score, axis=-1)
        out = jnp.einsum('bwhqk,bwhkd->bwhqd', attn, v)
        out = out.reshape(B, hs, wd, nh, ws, ws, dh)
        out = out.transpose(0, 1, 4, 2, 5, 3, 6).reshape(B, H, W, nh * dh)
        out = out.reshape(-1, nh * dh) @ self.w_out + self.b_out
        out = out.reshape(B, H, W, C)
        if self.shift:
            out = jnp.roll(out, (-roll, -roll), axis=(1, 2))
        return out


if __name__ == "__main__":
    # Small shapes: batch=2, H=W=8, dim=32, n_head=4, dim_head=8, window=4 -> 4 windows of 16 tokens.
    batch, H, W, dim = 2, 8, 8, 32
    n_head, dim_head, window_size = 4, 8, 4

    key = jax.random.PRNGKey(0)
    kx, kp = jax.random.split(key)
    x = jax.random.normal(kx, (batch, H, W, dim), jnp.float32)

    ok = True
    for shift in (0, 1):
        mod = MultiHeadedLocalAttentionPallas(
            dim, n_head, dim_head, (H, W), window_size, shift, kp)
        out = jax.block_until_ready(mod(x))
        ref = jax.block_until_ready(mod.reference(x))
        # tolerance accounts for bf16 matmul operands + pl.reciprocal(approx=True);
        # accumulation and softmax are in f32, so errors stay well below this bound.
        if not np.allclose(np.asarray(out, np.float32), np.asarray(ref), atol=1e-2, rtol=1e-2):
            ok = False
            print(f"mismatch for shift={shift}: "
                  f"max abs err={np.max(np.abs(np.asarray(out, np.float32) - np.asarray(ref)))}")

    if ok:
        print("KERNEL_OK")
</pallas_src>

<mosaic_0001>
module attributes {stable_mosaic.version = 11 : i64} {
  func.func @_linear_kernel(%arg0: i32, %arg1: memref<64x32xbf16, #tpu.memory_space<vmem>>, %arg2: memref<32x96xbf16, #tpu.memory_space<vmem>>, %arg3: memref<1x96xf32, #tpu.memory_space<vmem>>, %arg4: memref<64x96xbf16, #tpu.memory_space<vmem>>) attributes {dimension_semantics = [#tpu.dimension_semantics<parallel>], iteration_bounds = array<i64: 2>, scalar_prefetch = 0 : i64, scratch_operands = 0 : i64, tpu.core_type = #tpu.core_type<tc>, window_params = [{transform_indices = @transform_0, window_bounds = array<i64: 64, 32>}, {pipeline_mode = #tpu.pipeline_mode<synchronous>, transform_indices = @transform_1, window_bounds = array<i64: 32, 96>}, {pipeline_mode = #tpu.pipeline_mode<synchronous>, transform_indices = @transform_2, window_bounds = array<i64: 1, 96>}, {transform_indices = @transform_3, window_bounds = array<i64: 64, 96>}]} {
    %c0 = arith.constant 0 : index
    %c0_0 = arith.constant 0 : index
    %0 = vector.load %arg1[%c0, %c0_0] : memref<64x32xbf16, #tpu.memory_space<vmem>>, vector<64x32xbf16>
    %c0_1 = arith.constant 0 : index
    %c0_2 = arith.constant 0 : index
    %1 = vector.load %arg2[%c0_1, %c0_2] : memref<32x96xbf16, #tpu.memory_space<vmem>>, vector<32x96xbf16>
    %cst = arith.constant dense<0.000000e+00> : vector<64x96xf32>
    %2 = tpu.matmul %0, %1, %cst {dimension_numbers = #tpu.dot_dimension_numbers<[1], [0], [0], [1], [0, 0, 1, 1], [], []>} : vector<64x32xbf16>, vector<32x96xbf16>, vector<64x96xf32> -> vector<64x96xf32>
    %c0_3 = arith.constant 0 : index
    %c0_4 = arith.constant 0 : index
    %3 = vector.load %arg3[%c0_3, %c0_4] : memref<1x96xf32, #tpu.memory_space<vmem>>, vector<1x96xf32>
    %4 = vector.broadcast %3 : vector<1x96xf32> to vector<64x96xf32>
    %5 = arith.addf %2, %4 : vector<64x96xf32>
    %6 = arith.truncf %5 : vector<64x96xf32> to vector<64x96xbf16>
    %c0_5 = arith.constant 0 : index
    %c0_6 = arith.constant 0 : index
    %7 = vector.load %arg4[%c0_5, %c0_6] : memref<64x96xbf16, #tpu.memory_space<vmem>>, vector<64x96xbf16>
    tpu.vector_store %arg4[%c0_5, %c0_6], %6 {strides = array<i32>} : memref<64x96xbf16, #tpu.memory_space<vmem>>, vector<64x96xbf16>,
    return
  }
  func.func @transform_0(%arg0: i32) -> (i32, i32) {
    %c0_i32 = arith.constant 0 : i32
    %c0_i32_0 = arith.constant 0 : i32
    return %arg0, %c0_i32 : i32, i32
  }
  func.func @transform_1(%arg0: i32) -> (i32, i32) {
    %c0_i32 = arith.constant 0 : i32
    %c0_i32_0 = arith.constant 0 : i32
    %c0_i32_1 = arith.constant 0 : i32
    return %c0_i32, %c0_i32_0 : i32, i32
  }
  func.func @transform_2(%arg0: i32) -> (i32, i32) {
    %c0_i32 = arith.constant 0 : i32
    %c0_i32_0 = arith.constant 0 : i32
    %c0_i32_1 = arith.constant 0 : i32
    return %c0_i32, %c0_i32_0 : i32, i32
  }
  func.func @transform_3(%arg0: i32) -> (i32, i32) {
    %c0_i32 = arith.constant 0 : i32
    %c0_i32_0 = arith.constant 0 : i32
    return %arg0, %c0_i32 : i32, i32
  }
}

</mosaic_0001>

<llo_original>
// kernel: tpu_custom_call.1
$region0: #{tpu_custom_call.1}
  #allocation0 [shape = 'u32[]', space=smem, size = 0x4, offset = 0x4, fixed_abs, tag = 'smem constant byte address 0x4 - core index']
  #allocation1 [shape = 'u32[144,128]{1,0:T(1,128)}', space=vmem, size = 0x12000, scoped, tag = 'internal scratch']
  %s0 = inlined_call_operand.vmem [shape: bf16[128,32], index: 0, kind: input, shape index: {}]
  %s1 = inlined_call_operand.vmem [shape: bf16[32,96], index: 1, kind: input, shape index: {}]
  %s2 = inlined_call_operand.vmem [shape: f32[1,96], index: 2, kind: input, shape index: {}]
  %s3 = inlined_call_operand.vmem [shape: bf16[128,96], index: 3, kind: output, shape index: {}]
  %s4 = sld [smem:[#allocation0]]
  $region45: #{tpu_custom_call.1} parent=0
    _
  %s6 = ssub.s32 1, %s4
  %s7 = scalar_select 0, %s6, %s4
  loop: start=0, step=1, limit=4
  $region2: #{tpu_custom_call.1} parent=0 // loop_pre_header
    _
  $region3: #{tpu_custom_call.1} parent=0 // loop_header
    %s9 = sphi 0, %s13
    %p10 = scmp.ge.s32.totalorder %s9, 4
    %s19 = sphi 0, %s21
    %s22 = sphi 0, %s19
    %s23 = sphi 0, %s22
    %s39 = sphi 0, %s23
    %s43 = sphi 0, %s43
    %s45 = sphi 0, %s43
    %s46 = sphi 0, %s45
    %s60 = sphi 0, %s46
    %s64 = sphi 0, %s64
    %s66 = sphi 0, %s64
    %s67 = sphi 0, %s66
    %s81 = sphi 0, %s67
    %s87 = sphi 0, %s89
    %s90 = sphi 0, %s87
    %s91 = sphi 0, %s90
    %s107 = sphi 0, %s91
  $region4: #{tpu_custom_call.1} parent=0 // loop_header_branch
    %12 = sbr.rel (%p10) target = $region8
  $region5: #{tpu_custom_call.1} parent=0 // loop_body
    %s14 = ssub.s32 %s9, 1
    %s15 = ssub.s32 %s9, 2
    %s16 = sadd.s32 %s9, 1
    %s17 = ssub.s32 %s9, %s16
    %p18 = scmp.eq.s32.totalorder %s17, 0
    %s20 = sadd.s32 %s19, 1
    %s21 = scalar_select %p18, %s19, %s20
    %p24 = pneg %p18
    %p25 = scmp.eq.s32.totalorder %s9, 1
    %p26 = por %p24, %p25
    %p27 = scmp.ne.s32.totalorder %s19, %s22
    %p28 = scmp.eq.s32.totalorder %s9, 0
    %p29 = por %p27, %p28
    %p30 = scmp.ne.s32.totalorder %s19, %s22
    %p31 = scmp.eq.s32.totalorder %s14, 1
    %p32 = por %p30, %p31
    %p33 = scmp.ne.s32.totalorder %s22, %s23
    %p34 = scmp.eq.s32.totalorder %s14, 0
    %p35 = por %p33, %p34
    %p36 = scmp.ne.s32.totalorder %s22, %s23
    %p37 = scmp.eq.s32.totalorder %s15, 1
    %p38 = por %p36, %p37
    %p40 = scmp.ne.s32.totalorder %s23, %s39
    %p41 = scmp.eq.s32.totalorder %s15, 0
    %p42 = por %p40, %p41
    %s44 = sadd.s32 %s43, 1
    %p47 = scmp.eq.s32.totalorder %s9, 1
    %p48 = scmp.ne.s32.totalorder %s43, %s45
    %p49 = scmp.eq.s32.totalorder %s9, 0
    %p50 = por %p48, %p49
    %p51 = scmp.ne.s32.totalorder %s43, %s45
    %p52 = scmp.eq.s32.totalorder %s14, 1
    %p53 = por %p51, %p52
    %p54 = scmp.ne.s32.totalorder %s45, %s46
    %p55 = scmp.eq.s32.totalorder %s14, 0
    %p56 = por %p54, %p55
    %p57 = scmp.ne.s32.totalorder %s45, %s46
    %p58 = scmp.eq.s32.totalorder %s15, 1
    %p59 = por %p57, %p58
    %p61 = scmp.ne.s32.totalorder %s46, %s60
    %p62 = scmp.eq.s32.totalorder %s15, 0
    %p63 = por %p61, %p62
    %s65 = sadd.s32 %s64, 1
    %p68 = scmp.eq.s32.totalorder %s9, 1
    %p69 = scmp.ne.s32.totalorder %s64, %s66
    %p70 = scmp.eq.s32.totalorder %s9, 0
    %p71 = por %p69, %p70
    %p72 = scmp.ne.s32.totalorder %s64, %s66
    %p73 = scmp.eq.s32.totalorder %s14, 1
    %p74 = por %p72, %p73
    %p75 = scmp.ne.s32.totalorder %s66, %s67
    %p76 = scmp.eq.s32.totalorder %s14, 0
    %p77 = por %p75, %p76
    %p78 = scmp.ne.s32.totalorder %s66, %s67
    %p79 = scmp.eq.s32.totalorder %s15, 1
    %p80 = por %p78, %p79
    %p82 = scmp.ne.s32.totalorder %s67, %s81
    %p83 = scmp.eq.s32.totalorder %s15, 0
    %p84 = por %p82, %p83
    %s85 = ssub.s32 %s9, %s16
    %p86 = scmp.eq.s32.totalorder %s85, 0
    %s88 = sadd.s32 %s87, 1
    %s89 = scalar_select %p86, %s87, %s88
    %p92 = pneg %p86
    %p93 = scmp.eq.s32.totalorder %s9, 1
    %p94 = por %p92, %p93
    %p95 = scmp.ne.s32.totalorder %s87, %s90
    %p96 = scmp.eq.s32.totalorder %s9, 0
    %p97 = por %p95, %p96
    %p98 = scmp.ne.s32.totalorder %s87, %s90
    %p99 = scmp.eq.s32.totalorder %s14, 1
    %p100 = por %p98, %p99
    %p101 = scmp.ne.s32.totalorder %s90, %s91
    %p102 = scmp.eq.s32.totalorder %s14, 0
    %p103 = por %p101, %p102
    %p104 = scmp.ne.s32.totalorder %s90, %s91
    %p105 = scmp.eq.s32.totalorder %s15, 1
    %p106 = por %p104, %p105
    %p108 = scmp.ne.s32.totalorder %s91, %s107
    %p109 = scmp.eq.s32.totalorder %s15, 0
    %p110 = por %p108, %p109
    %p111 = scmp.le.s32.totalorder 1, %s9
    %p112 = scmp.lt.s32.totalorder %s9, 3
    %p113 = pnand %p111, %p112
    %p114 = pneg %p113
    // Predicated region
    $region9: #{tpu_custom_call.1} parent=5 // pred_check
      _
    $region10: #{tpu_custom_call.1} parent=5 // pred_check_branch
      %116 = sbr.rel (%p113) target = $region12
    $region11: #{tpu_custom_call.1} parent=5 // pred_region
      %s117 = ssub.s32 %s9, 1
      // Predicated region
      $region13: #{tpu_custom_call.1} parent=11 // pred_check
        %p118 = pneg %p56
      $region14: #{tpu_custom_call.1} parent=11 // pred_check_branch
        %120 = sbr.rel (%p118) target = $region16
      $region15: #{tpu_custom_call.1} parent=11 // pred_region
        _
      $region16: #{tpu_custom_call.1} parent=11 // pred_fallthru
        _
      // Predicated region
      $region17: #{tpu_custom_call.1} parent=11 // pred_check
        %p121 = pneg %p77
      $region18: #{tpu_custom_call.1} parent=11 // pred_check_branch
        %123 = sbr.rel (%p121) target = $region20
      $region19: #{tpu_custom_call.1} parent=11 // pred_region
        _
      $region20: #{tpu_custom_call.1} parent=11 // pred_fallthru
        _
    $region12: #{tpu_custom_call.1} parent=5 // pred_fallthru
      _
    %p124 = scmp.lt.s32.totalorder %s9, 2
    // Predicated region
    $region21: #{tpu_custom_call.1} parent=5 // pred_check
      %p125 = pneg %p124
    $region22: #{tpu_custom_call.1} parent=5 // pred_check_branch
      %127 = sbr.rel (%p125) target = $region24
    $region23: #{tpu_custom_call.1} parent=5 // pred_region
      // Predicated region
      $region25: #{tpu_custom_call.1} parent=23 // pred_check
        %p128 = pneg %p29
      $region26: #{tpu_custom_call.1} parent=23 // pred_check_branch
        %130 = sbr.rel (%p128) target = $region28
      $region27: #{tpu_custom_call.1} parent=23 // pred_region
        %s131 = smul.u32 8, %s9
        %p132 = scmp.lt.s32.totalorder %s131, 15
        %s133 = scalar_select %p132, %s131, 15
        %s134 = smul.addr %s133, 4
        %s135 = scalar_lea.vmem %s0, %s134
        %s136 = smul.u32 8, %s9
      $region28: #{tpu_custom_call.1} parent=23 // pred_fallthru
        _
    $region24: #{tpu_custom_call.1} parent=5 // pred_fallthru
      _
    %p137 = scmp.le.s32.totalorder 1, %s9
    %p138 = scmp.lt.s32.totalorder %s9, 3
    %p139 = pnand %p137, %p138
    %p140 = pneg %p139
    // Predicated region
    $region29: #{tpu_custom_call.1} parent=5 // pred_check
      _
    $region30: #{tpu_custom_call.1} parent=5 // pred_check_branch
      %142 = sbr.rel (%p139) target = $region32
    $region31: #{tpu_custom_call.1} parent=5 // pred_region
      %s143 = ssub.s32 %s9, 1
      %s144 = smul.u32 8, %s14
      %p145 = scmp.lt.s32.totalorder %s144, 15
      %s146 = scalar_select %p145, %s144, 15
      %s147 = smul.addr %s146, 4
      %s148 = scalar_lea.vmem %s0, %s147
      %p149 = pneg %p35
      %p150 = pneg %p32
      %p151 = pneg %p56
      %p152 = pneg %p53
      %p153 = pneg %p77
      %p154 = pneg %p74
      %p155 = pneg %p103
      %p156 = pneg %p100
      %s157 = smul.u32 8, %s14
      %p158 = scmp.lt.s32.totalorder %s157, 15
      %s159 = scalar_select %p158, %s157, 15
      %s160 = smul.addr %s159, 4
      %s161 = scalar_lea.vmem %s3, %s160
      %s162 = smul.u32 8, %s14
      %p163 = scmp.lt.s32.totalorder %s162, 15
      %s164 = scalar_select %p163, %s162, 15
      %s165 = smul.addr %s164, 4
      %s166 = scalar_lea.vmem %s0, %s165
      %s167 = smul.u32 8, %s14
      %s168 = smul.u32 8, %s14
      %p169 = scmp.lt.s32.totalorder %s168, 15
      %s170 = scalar_select %p169, %s168, 15
      %s171 = smul.addr %s170, 4
      %s172 = scalar_lea.vmem %s3, %s171
      %s173 = smul.u32 8, %s14
      %v175 = vld [vmem:[%s166] sm:$0xf]
      %v176 = vld [vmem:[%s166 + $0x4] sm:$0xf]
      %v177 = vld [vmem:[%s166 + $0x8] sm:$0xf]
      %v178 = vld [vmem:[%s166 + $0xc] sm:$0xf]
      %v179 = vld [vmem:[%s166 + $0x10] sm:$0xf]
      %v180 = vld [vmem:[%s166 + $0x14] sm:$0xf]
      %v181 = vld [vmem:[%s166 + $0x18] sm:$0xf]
      %v182 = vld [vmem:[%s166 + $0x1c] sm:$0xf]
      %v183 = vld [vmem:[%s1] sm:$0xf]
      %v184 = vld [vmem:[%s1 + $0x4] sm:$0xf]
      %v185 = vld [vmem:[%s1 + $0x8] sm:$0xf]
      %v186 = vld [vmem:[%s1 + $0xc] sm:$0xf]
      %v187 = vld [vmem:[%s2] sm:$0x1]
      %v189 = vlaneseq
      %v190 = vshrl.u32 %v189, 7
      %v191 = vsub.s32 0, %v190
      %v192 = vrot.slane %v187, %v191
      %v202 = vunpack.c.l.b16 %v175
      %v203 = vunpack.c.l.b16 %v176
      %v204 = vunpack.c.l.b16 %v177
      %v205 = vunpack.c.l.b16 %v178
      %v206 = vunpack.c.l.b16 %v179
      %v207 = vunpack.c.l.b16 %v180
      %v208 = vunpack.c.l.b16 %v181
      %v209 = vunpack.c.l.b16 %v182
      %v210 = vpack.c.b16 %v203, %v202
      %v211 = vpack.c.b16 %v205, %v204
      %v212 = vpack.c.b16 %v207, %v206
      %v213 = vpack.c.b16 %v209, %v208
      %v218 = vunpack.c.l.b16 %v183
      %v219 = vunpack.c.l.b16 %v184
      %v220 = vunpack.c.l.b16 %v185
      %v221 = vunpack.c.l.b16 %v186
      %v222 = vpack.c.b16 %v219, %v218
      %v223 = vpack.c.b16 %v221, %v220
      %vm226 = vcmask 261120
      %v228 = vsel %vm226, %v210, 0
      %v231 = vsel %vm226, %v211, 0
      %v234 = vsel %vm226, %v212, 0
      %v237 = vsel %vm226, %v213, 0
      %239 = vmatprep.subr.bf16.mxu0 0
      %240 = vmatpush1.bf16.msra.mxu0 %v222
      %241 = vmatprep.subr.bf16.mxu0 0
      %242 = vmatpush1.bf16.msra.mxu0 %v223
      %243 = vmatprep.subr.bf16.mxu0 0
      %244 = vmatpush1.bf16.msra.mxu0 0
      %245 = vmatprep.subr.bf16.mxu0 0
      %246 = vmatpush1.bf16.msra.mxu0 0
      %247 = vmatprep.subr.bf16.mxu0 0
      %248 = vmatpush1.bf16.msra.mxu0 0
      %249 = vmatprep.subr.bf16.mxu0 0
      %250 = vmatpush1.bf16.msra.mxu0 0
      %251 = vmatprep.subr.bf16.mxu0 0
      %252 = vmatpush1.bf16.msra.mxu0 0
      %253 = vmatprep.subr.bf16.mxu0 0
      %254 = vmatpush1.bf16.msra.mxu0 0
      %255 = vmatprep.subr.bf16.mxu0 0
      %256 = vmatpush1.bf16.msra.mxu0 0
      %257 = vmatprep.subr.bf16.mxu0 0
      %258 = vmatpush1.bf16.msra.mxu0 0
      %259 = vmatprep.subr.bf16.mxu0 0
      %260 = vmatpush1.bf16.msra.mxu0 0
      %261 = vmatprep.subr.bf16.mxu0 0
      %262 = vmatpush1.bf16.msra.mxu0 0
      %263 = vmatprep.subr.bf16.mxu0 0
      %264 = vmatpush1.bf16.msra.mxu0 0
      %265 = vmatprep.subr.bf16.mxu0 0
      %266 = vmatpush1.bf16.msra.mxu0 0
      %267 = vmatprep.subr.bf16.mxu0 0
      %268 = vmatpush1.bf16.msra.mxu0 0
      %269 = vmatprep.subr.bf16.mxu0 0
      %270 = vmatpush1.bf16.msra.mxu0 0
      %271 = vmatprep.mubr.bf16.mxu0 0
      %272 = vmatmul.mubr.bf16.gmra.mrb[0].mxu0 %v228
      %v273 = vpop.f32.mrb[0].mxu0
      %v274 = vadd.f32 %v192, %v273
      %v275 = vpop.f32.mrb[0].mxu0
      %v276 = vpop.f32.mrb[0].mxu0
      %v277 = vadd.f32 %v192, %v276
      %v278 = vpop.f32.mrb[0].mxu0
      %279 = vmatprep.mubr.bf16.mxu0 0
      %280 = vmatmul.mubr.bf16.gmra.mrb[0].mxu0 %v231
      %v281 = vpop.f32.mrb[0].mxu0
      %v282 = vadd.f32 %v192, %v281
      %v283 = vpop.f32.mrb[0].mxu0
      %v284 = vpop.f32.mrb[0].mxu0
      %v285 = vadd.f32 %v192, %v284
      %v286 = vpop.f32.mrb[0].mxu0
      %287 = vmatprep.mubr.bf16.mxu0 0
      %288 = vmatmul.mubr.bf16.gmra.mrb[0].mxu0 %v234
      %v289 = vpop.f32.mrb[0].mxu0
      %v290 = vadd.f32 %v192, %v289
      %v291 = vpop.f32.mrb[0].mxu0
      %v292 = vpop.f32.mrb[0].mxu0
      %v293 = vadd.f32 %v192, %v292
      %v294 = vpop.f32.mrb[0].mxu0
      %295 = vmatprep.mubr.bf16.mxu0 0
      %296 = vmatmul.mubr.bf16.gmra.mrb[0].mxu0 %v237
      %v297 = vpop.f32.mrb[0].mxu0
      %v298 = vadd.f32 %v192, %v297
      %v299 = vpop.f32.mrb[0].mxu0
      %v300 = vpop.f32.mrb[0].mxu0
      %v301 = vadd.f32 %v192, %v300
      %v302 = vpop.f32.mrb[0].mxu0
      %303 = vdwg.mxu0
      %v304 = vpack.c.bf16 %v277, %v274
      %v305 = vpack.c.bf16 %v285, %v282
      %v306 = vpack.c.bf16 %v293, %v290
      %v307 = vpack.c.bf16 %v301, %v298
      %v312 = vunpack.c.l.b16 %v304
      %v313 = vunpack.c.h.b16 %v304
      %v314 = vunpack.c.l.b16 %v305
      %v315 = vunpack.c.h.b16 %v305
      %v316 = vunpack.c.l.b16 %v306
      %v317 = vunpack.c.h.b16 %v306
      %v318 = vunpack.c.l.b16 %v307
      %v319 = vunpack.c.h.b16 %v307
      %v320 = vpack.c.b16 %v312, %v312
      %v321 = vpack.c.b16 %v313, %v313
      %v322 = vpack.c.b16 %v314, %v314
      %v323 = vpack.c.b16 %v315, %v315
      %v324 = vpack.c.b16 %v316, %v316
      %v325 = vpack.c.b16 %v317, %v317
      %v326 = vpack.c.b16 %v318, %v318
      %v327 = vpack.c.b16 %v319, %v319
      %vm336 = vcmask 781312
      %337 = vst.msk [vmem:[%s172] sm:$0xf] %vm336, %v320
      %338 = vst.msk [vmem:[%s172 + $0x4] sm:$0xf] %vm336, %v321
      %339 = vst.msk [vmem:[%s172 + $0x8] sm:$0xf] %vm336, %v322
      %340 = vst.msk [vmem:[%s172 + $0xc] sm:$0xf] %vm336, %v323
      %341 = vst.msk [vmem:[%s172 + $0x10] sm:$0xf] %vm336, %v324
      %342 = vst.msk [vmem:[%s172 + $0x14] sm:$0xf] %vm336, %v325
      %343 = vst.msk [vmem:[%s172 + $0x18] sm:$0xf] %vm336, %v326
      %344 = vst.msk [vmem:[%s172 + $0x1c] sm:$0xf] %vm336, %v327
      %s345 = smul.u32 8, %s14
      %p346 = scmp.lt.s32.totalorder %s345, 15
      %s347 = scalar_select %p346, %s345, 15
      %s348 = smul.addr %s347, 4
      %s349 = scalar_lea.vmem %s3, %s348
      // Predicated region
      $region33: #{tpu_custom_call.1} parent=31 // pred_check
        %p350 = pneg %p100
      $region34: #{tpu_custom_call.1} parent=31 // pred_check_branch
        %352 = sbr.rel (%p350) target = $region36
      $region35: #{tpu_custom_call.1} parent=31 // pred_region
        %s353 = smul.u32 8, %s14
      $region36: #{tpu_custom_call.1} parent=31 // pred_fallthru
        _
    $region32: #{tpu_custom_call.1} parent=5 // pred_fallthru
      _
    %p354 = scmp.le.s32.totalorder 2, %s9
    // Predicated region
    $region37: #{tpu_custom_call.1} parent=5 // pred_check
      %p355 = pneg %p354
    $region38: #{tpu_custom_call.1} parent=5 // pred_check_branch
      %357 = sbr.rel (%p355) target = $region40
    $region39: #{tpu_custom_call.1} parent=5 // pred_region
      %s358 = ssub.s32 %s9, 2
      // Predicated region
      $region41: #{tpu_custom_call.1} parent=39 // pred_check
        %p359 = pneg %p106
      $region42: #{tpu_custom_call.1} parent=39 // pred_check_branch
        %361 = sbr.rel (%p359) target = $region44
      $region43: #{tpu_custom_call.1} parent=39 // pred_region
        %s362 = smul.u32 8, %s15
        %p363 = scmp.lt.s32.totalorder %s362, 15
        %s364 = scalar_select %p363, %s362, 15
        %s365 = smul.addr %s364, 4
        %s366 = scalar_lea.vmem %s3, %s365
      $region44: #{tpu_custom_call.1} parent=39 // pred_fallthru
        _
    $region40: #{tpu_custom_call.1} parent=5 // pred_fallthru
      _
  $region6: #{tpu_custom_call.1} parent=0 // loop_footer
    %s13 = sadd.s32 1, %s9
  $region7: #{tpu_custom_call.1} parent=0 // loop_footer_branch
    %8 = sbr.rel target = $region3
  $region8: #{tpu_custom_call.1} parent=0 // loop_exit
    _

</llo_original>
